<compile_context>
chip_gen: v6e
topology: v6e:2x2x1
jax: 0.10.0
libtpu: 0.0.40
codegen_flags: <defaults>
</compile_context>

<pallas_src>
from functools import partial

import numpy as np
import jax
import jax.numpy as jnp
from jax.experimental import pallas as pl
from jax.experimental.pallas import tpu as pltpu


def _pick_ff_chunk(d_ff, target=512):
    """Largest chunk <= target that evenly divides d_ff (bounds the (tm, chunk) intermediate)."""
    if d_ff <= target:
        return d_ff
    for c in (512, 384, 256, 128, 64):
        if d_ff % c == 0:
            return c
    return d_ff


def _round_up(v, m):
    return ((v + m - 1) // m) * m


def _make_ffn_kernel(n_chunks, tf):
    def kernel(x_ref, w1_ref, b1_ref, w2_ref, b2_ref, o_ref):
        # linear_1 -> ReLU -> (dropout = identity in eval mode) -> linear_2.
        # d_ff handled in `n_chunks` static chunks of width `tf`: relu(x@W1+b1)@W2 splits
        # exactly into a sum over d_ff chunks, so only a (tm, tf) intermediate is ever live.
        x = x_ref[...].astype(w1_ref.dtype)           # in-kernel cast to MXU dtype (no HBM copy)
        acc = jnp.zeros(o_ref.shape, jnp.float32)     # f32 accumulator for the second matmul
        for c in range(n_chunks):                     # small static unroll; slices are views
            lo = c * tf
            h = jnp.dot(x, w1_ref[:, lo:lo + tf],
                        preferred_element_type=jnp.float32)
            h = jnp.maximum(h + b1_ref[:, lo:lo + tf], 0.0)        # bias + ReLU in f32 (v5e-safe)
            acc = acc + jnp.dot(h.astype(w2_ref.dtype), w2_ref[lo:lo + tf, :],
                                preferred_element_type=jnp.float32)
        o_ref[...] = (acc + b2_ref[...]).astype(o_ref.dtype)
    return kernel


def pack_ffn_params(w1, b1, w2, b2, *, use_bf16=True):
    """One-time pre-pack of FeedForward params (hoists all per-call casts out of the hot path).

    Weights stored (in, out): y = relu(x @ w1 + b1) @ w2 + b2.
    use_bf16=True is an explicit opt-in: weights feed the MXU in bf16 (f32 accumulation).
    """
    wdt = jnp.bfloat16 if use_bf16 else jnp.float32
    d_model, d_ff = w1.shape
    return dict(
        w1=jnp.asarray(w1, wdt),
        b1=jnp.asarray(b1, jnp.float32).reshape(1, d_ff),
        w2=jnp.asarray(w2, wdt),
        b2=jnp.asarray(b2, jnp.float32).reshape(1, d_model),
    )


@partial(jax.jit, static_argnames=("block_m", "out_dtype"))
def feed_forward(x, params, *, block_m=1024, out_dtype=None):
    """FeedForward.forward (eval mode: dropout = identity). x: (..., d_model)."""
    w1, b1, w2, b2 = params["w1"], params["b1"], params["w2"], params["b2"]
    orig_shape = x.shape
    d_model = orig_shape[-1]
    d_ff = w1.shape[-1]
    M = int(np.prod(orig_shape[:-1])) if len(orig_shape) > 1 else 1
    out_dt = x.dtype if out_dtype is None else jnp.dtype(out_dtype)

    # Collapse leading dims into one independent row slab (no dtype cast here).
    x2 = x.reshape(M, d_model)

    # Row tile: single step for small M (overhead-dominated anyway); for larger M use big
    # tiles (multiple of 8) but guarantee >= 2 tiles so the "parallel" axis can shard across
    # the two v7x TensorCores.  (tm, 512) f32 chunk intermediates keep VMEM well under the
    # default scoped budget on all of v5e / v6e / v7x at block_m=1024.
    if M > 256:
        tm = min((block_m // 8) * 8, _round_up(pl.cdiv(M, 2), 8))
        tm = max(tm, 8)
    else:
        tm = M
    grid_m = pl.cdiv(M, tm)

    tf = _pick_ff_chunk(d_ff)
    n_chunks = d_ff // tf
    kernel = _make_ffn_kernel(n_chunks, tf)

    flops = 2 * 2 * M * d_model * d_ff            # two matmuls
    bytes_accessed = (x2.size * x2.dtype.itemsize
                      + M * d_model * out_dt.itemsize
                      + w1.size * w1.dtype.itemsize
                      + w2.size * w2.dtype.itemsize
                      + b1.size * 4 + b2.size * 4)

    out = pl.pallas_call(
        kernel,
        grid=(grid_m,),
        in_specs=[
            pl.BlockSpec((tm, d_model), lambda i: (i, 0)),     # x rows (streamed)
            pl.BlockSpec((d_model, d_ff), lambda i: (0, 0)),   # w1: constant index -> fetched once
            pl.BlockSpec((1, d_ff), lambda i: (0, 0)),         # b1
            pl.BlockSpec((d_ff, d_model), lambda i: (0, 0)),   # w2: constant index -> fetched once
            pl.BlockSpec((1, d_model), lambda i: (0, 0)),      # b2
        ],
        out_specs=pl.BlockSpec((tm, d_model), lambda i: (i, 0)),
        out_shape=jax.ShapeDtypeStruct((M, d_model), out_dt),
        compiler_params=pltpu.CompilerParams(
            dimension_semantics=("parallel",),                 # row tiles are independent
            vmem_limit_bytes=32 * 1024 * 1024,
        ),
        cost_estimate=pl.CostEstimate(
            flops=flops, transcendentals=0, bytes_accessed=bytes_accessed),
    )(x2, w1, b1, w2, b2)
    return out.reshape(orig_shape)


def ref_feed_forward(x, w1, b1, w2, b2):
    """Pure-JAX f32 reference mirroring the PyTorch forward (eval mode: dropout = identity)."""
    h = jnp.maximum(x @ w1 + b1, 0.0)
    return h @ w2 + b2


if __name__ == "__main__":
    B, S, D_MODEL, D_FF = 2, 8, 32, 1024

    key = jax.random.PRNGKey(0)
    kx, k1, k2, k3, k4 = jax.random.split(key, 5)
    x = jax.random.normal(kx, (B, S, D_MODEL), jnp.float32)
    w1 = 0.02 * jax.random.normal(k1, (D_MODEL, D_FF), jnp.float32)
    b1 = 0.02 * jax.random.normal(k2, (D_FF,), jnp.float32)
    w2 = 0.02 * jax.random.normal(k3, (D_FF, D_MODEL), jnp.float32)
    b2 = 0.02 * jax.random.normal(k4, (D_MODEL,), jnp.float32)

    # One-time pre-pack (bf16 weights, (1, d) f32 biases) -- done at init, not per call.
    params = pack_ffn_params(w1, b1, w2, b2, use_bf16=True)

    y = feed_forward(x, params)
    jax.block_until_ready(y)

    y_ref = ref_feed_forward(x, w1, b1, w2, b2)
    assert y.shape == x.shape
    np.testing.assert_allclose(np.asarray(y), np.asarray(y_ref), atol=2e-2, rtol=2e-2)
    print("KERNEL_OK")
</pallas_src>

<mosaic_0001>
module attributes {stable_mosaic.version = 11 : i64} {
  func.func @kernel(%arg0: i32, %arg1: memref<16x32xf32, #tpu.memory_space<vmem>>, %arg2: memref<32x1024xbf16, #tpu.memory_space<vmem>>, %arg3: memref<1x1024xf32, #tpu.memory_space<vmem>>, %arg4: memref<1024x32xbf16, #tpu.memory_space<vmem>>, %arg5: memref<1x32xf32, #tpu.memory_space<vmem>>, %arg6: memref<16x32xf32, #tpu.memory_space<vmem>>) attributes {dimension_semantics = [#tpu.dimension_semantics<parallel>], iteration_bounds = array<i64: 1>, scalar_prefetch = 0 : i64, scratch_operands = 0 : i64, tpu.core_type = #tpu.core_type<tc>, window_params = [{transform_indices = @transform_0, window_bounds = array<i64: 16, 32>}, {pipeline_mode = #tpu.pipeline_mode<synchronous>, transform_indices = @transform_1, window_bounds = array<i64: 32, 1024>}, {pipeline_mode = #tpu.pipeline_mode<synchronous>, transform_indices = @transform_2, window_bounds = array<i64: 1, 1024>}, {pipeline_mode = #tpu.pipeline_mode<synchronous>, transform_indices = @transform_3, window_bounds = array<i64: 1024, 32>}, {pipeline_mode = #tpu.pipeline_mode<synchronous>, transform_indices = @transform_4, window_bounds = array<i64: 1, 32>}, {transform_indices = @transform_5, window_bounds = array<i64: 16, 32>}]} {
    %c0 = arith.constant 0 : index
    %c0_0 = arith.constant 0 : index
    %0 = vector.load %arg1[%c0, %c0_0] : memref<16x32xf32, #tpu.memory_space<vmem>>, vector<16x32xf32>
    %1 = arith.truncf %0 : vector<16x32xf32> to vector<16x32xbf16>
    %cst = arith.constant 0.000000e+00 : f32
    %2 = vector.broadcast %cst : f32 to vector<16x32xf32>
    %c0_1 = arith.constant 0 : index
    %c0_2 = arith.constant 0 : index
    %3 = vector.load %arg2[%c0_1, %c0_2] : memref<32x1024xbf16, #tpu.memory_space<vmem>>, vector<32x512xbf16>
    %cst_3 = arith.constant dense<0.000000e+00> : vector<16x512xf32>
    %4 = tpu.matmul %1, %3, %cst_3 {dimension_numbers = #tpu.dot_dimension_numbers<[1], [0], [0], [1], [0, 0, 1, 1], [], []>} : vector<16x32xbf16>, vector<32x512xbf16>, vector<16x512xf32> -> vector<16x512xf32>
    %c0_4 = arith.constant 0 : index
    %c0_5 = arith.constant 0 : index
    %5 = vector.load %arg3[%c0_4, %c0_5] : memref<1x1024xf32, #tpu.memory_space<vmem>>, vector<1x512xf32>
    %6 = vector.broadcast %5 : vector<1x512xf32> to vector<16x512xf32>
    %7 = arith.addf %4, %6 : vector<16x512xf32>
    %cst_6 = arith.constant 0.000000e+00 : f32
    %8 = vector.broadcast %cst_6 : f32 to vector<16x512xf32>
    %9 = arith.maximumf %7, %8 : vector<16x512xf32>
    %10 = arith.truncf %9 : vector<16x512xf32> to vector<16x512xbf16>
    %c0_7 = arith.constant 0 : index
    %c0_8 = arith.constant 0 : index
    %11 = vector.load %arg4[%c0_7, %c0_8] : memref<1024x32xbf16, #tpu.memory_space<vmem>>, vector<512x32xbf16>
    %cst_9 = arith.constant dense<0.000000e+00> : vector<16x32xf32>
    %12 = tpu.matmul %10, %11, %cst_9 {dimension_numbers = #tpu.dot_dimension_numbers<[1], [0], [0], [1], [0, 0, 1, 1], [], []>} : vector<16x512xbf16>, vector<512x32xbf16>, vector<16x32xf32> -> vector<16x32xf32>
    %13 = arith.addf %2, %12 : vector<16x32xf32>
    %c0_10 = arith.constant 0 : index
    %c512 = arith.constant 512 : index
    %14 = vector.load %arg2[%c0_10, %c512] : memref<32x1024xbf16, #tpu.memory_space<vmem>>, vector<32x512xbf16>
    %cst_11 = arith.constant dense<0.000000e+00> : vector<16x512xf32>
    %15 = tpu.matmul %1, %14, %cst_11 {dimension_numbers = #tpu.dot_dimension_numbers<[1], [0], [0], [1], [0, 0, 1, 1], [], []>} : vector<16x32xbf16>, vector<32x512xbf16>, vector<16x512xf32> -> vector<16x512xf32>
    %c0_12 = arith.constant 0 : index
    %c512_13 = arith.constant 512 : index
    %16 = vector.load %arg3[%c0_12, %c512_13] : memref<1x1024xf32, #tpu.memory_space<vmem>>, vector<1x512xf32>
    %17 = vector.broadcast %16 : vector<1x512xf32> to vector<16x512xf32>
    %18 = arith.addf %15, %17 : vector<16x512xf32>
    %cst_14 = arith.constant 0.000000e+00 : f32
    %19 = vector.broadcast %cst_14 : f32 to vector<16x512xf32>
    %20 = arith.maximumf %18, %19 : vector<16x512xf32>
    %21 = arith.truncf %20 : vector<16x512xf32> to vector<16x512xbf16>
    %c512_15 = arith.constant 512 : index
    %c0_16 = arith.constant 0 : index
    %22 = vector.load %arg4[%c512_15, %c0_16] : memref<1024x32xbf16, #tpu.memory_space<vmem>>, vector<512x32xbf16>
    %cst_17 = arith.constant dense<0.000000e+00> : vector<16x32xf32>
    %23 = tpu.matmul %21, %22, %cst_17 {dimension_numbers = #tpu.dot_dimension_numbers<[1], [0], [0], [1], [0, 0, 1, 1], [], []>} : vector<16x512xbf16>, vector<512x32xbf16>, vector<16x32xf32> -> vector<16x32xf32>
    %24 = arith.addf %13, %23 : vector<16x32xf32>
    %c0_18 = arith.constant 0 : index
    %c0_19 = arith.constant 0 : index
    %25 = vector.load %arg5[%c0_18, %c0_19] : memref<1x32xf32, #tpu.memory_space<vmem>>, vector<1x32xf32>
    %26 = vector.broadcast %25 : vector<1x32xf32> to vector<16x32xf32>
    %27 = arith.addf %24, %26 : vector<16x32xf32>
    %c0_20 = arith.constant 0 : index
    %c0_21 = arith.constant 0 : index
    %28 = vector.load %arg6[%c0_20, %c0_21] : memref<16x32xf32, #tpu.memory_space<vmem>>, vector<16x32xf32>
    tpu.vector_store %arg6[%c0_20, %c0_21], %27 {strides = array<i32>} : memref<16x32xf32, #tpu.memory_space<vmem>>, vector<16x32xf32>,
    return
  }
  func.func @transform_0(%arg0: i32) -> (i32, i32) {
    %c0_i32 = arith.constant 0 : i32
    %c0_i32_0 = arith.constant 0 : i32
    return %arg0, %c0_i32 : i32, i32
  }
  func.func @transform_1(%arg0: i32) -> (i32, i32) {
    %c0_i32 = arith.constant 0 : i32
    %c0_i32_0 = arith.constant 0 : i32
    %c0_i32_1 = arith.constant 0 : i32
    return %c0_i32, %c0_i32_0 : i32, i32
  }
  func.func @transform_2(%arg0: i32) -> (i32, i32) {
    %c0_i32 = arith.constant 0 : i32
    %c0_i32_0 = arith.constant 0 : i32
    %c0_i32_1 = arith.constant 0 : i32
    return %c0_i32, %c0_i32_0 : i32, i32
  }
  func.func @transform_3(%arg0: i32) -> (i32, i32) {
    %c0_i32 = arith.constant 0 : i32
    %c0_i32_0 = arith.constant 0 : i32
    %c0_i32_1 = arith.constant 0 : i32
    return %c0_i32, %c0_i32_0 : i32, i32
  }
  func.func @transform_4(%arg0: i32) -> (i32, i32) {
    %c0_i32 = arith.constant 0 : i32
    %c0_i32_0 = arith.constant 0 : i32
    %c0_i32_1 = arith.constant 0 : i32
    return %c0_i32, %c0_i32_0 : i32, i32
  }
  func.func @transform_5(%arg0: i32) -> (i32, i32) {
    %c0_i32 = arith.constant 0 : i32
    %c0_i32_0 = arith.constant 0 : i32
    return %arg0, %c0_i32 : i32, i32
  }
}

</mosaic_0001>

<llo_original>
// kernel: feed_forward.1
$region0: #{feed_forward.1}
  #allocation0 [shape = 'u32[]', space=smem, size = 0x4, offset = 0x4, fixed_abs, tag = 'smem constant byte address 0x4 - core index']
  #allocation1 [shape = 'u32[144,128]{1,0:T(1,128)}', space=vmem, size = 0x12000, scoped, tag = 'internal scratch']
  %s0 = inlined_call_operand.vmem [shape: f32[16,32], index: 0, kind: input, shape index: {}]
  %s1 = inlined_call_operand.vmem [shape: bf16[32,1024], index: 1, kind: input, shape index: {}]
  %s2 = inlined_call_operand.vmem [shape: f32[1,1024], index: 2, kind: input, shape index: {}]
  %s3 = inlined_call_operand.vmem [shape: bf16[1024,32], index: 3, kind: input, shape index: {}]
  %s4 = inlined_call_operand.vmem [shape: f32[1,32], index: 4, kind: input, shape index: {}]
  %s5 = inlined_call_operand.hbm [shape: f32[16,32], index: 5, kind: output, shape index: {}]
  %s6 = sld [smem:[#allocation0]]
  $region30: #{feed_forward.1} parent=0
    _
  %s8 = ssub.s32 1, %s6
  %s9 = scalar_select 0, %s8, %s6
  $region1: #{feed_forward.1} parent=0
    #allocation2 [shape = 'u8[8192]{0}', space=vmem, size = 0x2000, scoped, tag = 'output window, operand 0, single buffered']
    #allocation3 [shape = 's32[1]{0}', space=sflag, size = 0x4, scoped, tag = 'scoped memory for feed_forward.1']
    %10 = vsyncpa [#allocation3], 0
    // Predicated region
    $region2: #{feed_forward.1} parent=1 // pred_check
      _
    $region3: #{feed_forward.1} parent=1 // pred_check_branch
      %12 = sbr.rel (0) target = $region5
    $region4: #{feed_forward.1} parent=1 // pred_region
      _
    $region5: #{feed_forward.1} parent=1 // pred_fallthru
      _
    // Predicated region
    $region6: #{feed_forward.1} parent=1 // pred_check
      _
    $region7: #{feed_forward.1} parent=1 // pred_check_branch
      %14 = sbr.rel (0) target = $region9
    $region8: #{feed_forward.1} parent=1 // pred_region
      _
    $region9: #{feed_forward.1} parent=1 // pred_fallthru
      _
    // Predicated region
    $region10: #{feed_forward.1} parent=1 // pred_check
      _
    $region11: #{feed_forward.1} parent=1 // pred_check_branch
      %16 = sbr.rel (0) target = $region13
    $region12: #{feed_forward.1} parent=1 // pred_region
      _
    $region13: #{feed_forward.1} parent=1 // pred_fallthru
      _
    // Predicated region
    $region14: #{feed_forward.1} parent=1 // pred_check
      _
    $region15: #{feed_forward.1} parent=1 // pred_check_branch
      %18 = sbr.rel (0) target = $region17
    $region16: #{feed_forward.1} parent=1 // pred_region
      _
    $region17: #{feed_forward.1} parent=1 // pred_fallthru
      _
    // Predicated region
    $region18: #{feed_forward.1} parent=1 // pred_check
      _
    $region19: #{feed_forward.1} parent=1 // pred_check_branch
      %20 = sbr.rel (0) target = $region21
    $region20: #{feed_forward.1} parent=1 // pred_region
      _
    $region21: #{feed_forward.1} parent=1 // pred_fallthru
      _
    %v22 = vld [vmem:[%s0] sm:$0xff]
    %v23 = vld [vmem:[%s0 + $0x8] sm:$0xff]
    %v24 = vpack.c.bf16 %v23, %v22
    %v25 = vld [vmem:[%s1] sm:$0xff]
    %v26 = vld [vmem:[%s1 + $0x8] sm:$0xff]
    %v27 = vld [vmem:[%s1 + $0x20] sm:$0xff]
    %v28 = vld [vmem:[%s1 + $0x28] sm:$0xff]
    %v29 = vld [vmem:[%s1 + $0x40] sm:$0xff]
    %v30 = vld [vmem:[%s1 + $0x48] sm:$0xff]
    %v31 = vld [vmem:[%s1 + $0x60] sm:$0xff]
    %v32 = vld [vmem:[%s1 + $0x68] sm:$0xff]
    %v33 = vld [vmem:[%s2] sm:$0xf]
    %v35 = vlaneseq
    %v36 = vshrl.u32 %v35, 7
    %v37 = vsub.s32 0, %v36
    %v38 = vrot.slane %v33, %v37
    %v39 = vlaneseq
    %v40 = vshrl.u32 %v39, 7
    %v41 = vsub.s32 1, %v40
    %v42 = vrot.slane %v33, %v41
    %v43 = vlaneseq
    %v44 = vshrl.u32 %v43, 7
    %v45 = vsub.s32 2, %v44
    %v46 = vrot.slane %v33, %v45
    %v47 = vlaneseq
    %v48 = vshrl.u32 %v47, 7
    %v49 = vsub.s32 3, %v48
    %v50 = vrot.slane %v33, %v49
    %v63 = vunpack.c.l.b16 %v25
    %v64 = vunpack.c.h.b16 %v25
    %v65 = vunpack.c.l.b16 %v26
    %v66 = vunpack.c.h.b16 %v26
    %v67 = vunpack.c.l.b16 %v27
    %v68 = vunpack.c.h.b16 %v27
    %v69 = vunpack.c.l.b16 %v28
    %v70 = vunpack.c.h.b16 %v28
    %v71 = vunpack.c.l.b16 %v29
    %v72 = vunpack.c.h.b16 %v29
    %v73 = vunpack.c.l.b16 %v30
    %v74 = vunpack.c.h.b16 %v30
    %v75 = vunpack.c.l.b16 %v31
    %v76 = vunpack.c.h.b16 %v31
    %v77 = vunpack.c.l.b16 %v32
    %v78 = vunpack.c.h.b16 %v32
    %v79 = vpack.c.b16 %v67, %v63
    %v80 = vpack.c.b16 %v68, %v64
    %v81 = vpack.c.b16 %v69, %v65
    %v82 = vpack.c.b16 %v70, %v66
    %v83 = vpack.c.b16 %v75, %v71
    %v84 = vpack.c.b16 %v76, %v72
    %v85 = vpack.c.b16 %v77, %v73
    %v86 = vpack.c.b16 %v78, %v74
    %vm95 = vcmask 261120
    %v97 = vsel %vm95, %v24, 0
    %99 = vmatprep.subr.bf16.mxu0 0
    %100 = vmatpush1.bf16.msra.mxu0 0
    %101 = vmatprep.subr.bf16.mxu0 0
    %102 = vmatpush1.bf16.msra.mxu0 0
    %103 = vmatprep.subr.bf16.mxu0 0
    %104 = vmatpush1.bf16.msra.mxu0 0
    %105 = vmatprep.subr.bf16.mxu0 0
    %106 = vmatpush1.bf16.msra.mxu0 0
    %107 = vmatprep.subr.bf16.mxu0 0
    %108 = vmatpush1.bf16.msra.mxu0 0
    %109 = vmatprep.subr.bf16.mxu0 0
    %110 = vmatpush1.bf16.msra.mxu0 0
    %111 = vmatprep.subr.bf16.mxu0 %v84
    %112 = vmatpush1.bf16.msra.mxu0 %v83
    %113 = vmatprep.subr.bf16.mxu0 %v80
    %114 = vmatpush1.bf16.msra.mxu0 %v79
    %115 = vmatprep.subr.bf16.mxu0 0
    %116 = vmatpush2.bf16.msra.mxu0 0
    %117 = vmatprep.subr.bf16.mxu0 0
    %118 = vmatpush2.bf16.msra.mxu0 0
    %119 = vmatprep.subr.bf16.mxu0 0
    %120 = vmatpush2.bf16.msra.mxu0 0
    %121 = vmatprep.subr.bf16.mxu0 0
    %122 = vmatpush2.bf16.msra.mxu0 0
    %123 = vmatprep.subr.bf16.mxu0 0
    %124 = vmatpush2.bf16.msra.mxu0 0
    %125 = vmatprep.subr.bf16.mxu0 0
    %126 = vmatpush2.bf16.msra.mxu0 0
    %127 = vmatprep.subr.bf16.mxu0 0
    %128 = vmatpush2.bf16.msra.mxu0 0
    %129 = vmatprep.subr.bf16.mxu0 0
    %130 = vmatpush2.bf16.msra.mxu0 0
    %131 = vmatprep.mubr.bf16.mxu0 0
    %132 = vmatmul.mubr.bf16.gmra.mxu0 %v97
    %v133 = vpop.f32.mrf.mxu0
    %v134 = vadd.f32 %v38, %v133
    %v135 = vpop.f32.mrf.mxu0
    %v136 = vadd.f32 %v42, %v135
    %v137 = vpop.f32.mrf.mxu0
    %v138 = vadd.f32 %v38, %v137
    %v139 = vpop.f32.mrf.mxu0
    %v140 = vadd.f32 %v42, %v139
    %141 = vdwg.mxu0
    %142 = vmatprep.subr.bf16.mxu0 0
    %143 = vmatpush1.bf16.msra.mxu0 0
    %144 = vmatprep.subr.bf16.mxu0 0
    %145 = vmatpush1.bf16.msra.mxu0 0
    %146 = vmatprep.subr.bf16.mxu0 0
    %147 = vmatpush1.bf16.msra.mxu0 0
    %148 = vmatprep.subr.bf16.mxu0 0
    %149 = vmatpush1.bf16.msra.mxu0 0
    %150 = vmatprep.subr.bf16.mxu0 0
    %151 = vmatpush1.bf16.msra.mxu0 0
    %152 = vmatprep.subr.bf16.mxu0 0
    %153 = vmatpush1.bf16.msra.mxu0 0
    %154 = vmatprep.subr.bf16.mxu0 %v86
    %155 = vmatpush1.bf16.msra.mxu0 %v85
    %156 = vmatprep.subr.bf16.mxu0 %v82
    %157 = vmatpush1.bf16.msra.mxu0 %v81
    %158 = vmatprep.subr.bf16.mxu0 0
    %159 = vmatpush2.bf16.msra.mxu0 0
    %160 = vmatprep.subr.bf16.mxu0 0
    %161 = vmatpush2.bf16.msra.mxu0 0
    %162 = vmatprep.subr.bf16.mxu0 0
    %163 = vmatpush2.bf16.msra.mxu0 0
    %164 = vmatprep.subr.bf16.mxu0 0
    %165 = vmatpush2.bf16.msra.mxu0 0
    %166 = vmatprep.subr.bf16.mxu0 0
    %167 = vmatpush2.bf16.msra.mxu0 0
    %168 = vmatprep.subr.bf16.mxu0 0
    %169 = vmatpush2.bf16.msra.mxu0 0
    %170 = vmatprep.subr.bf16.mxu0 0
    %171 = vmatpush2.bf16.msra.mxu0 0
    %172 = vmatprep.subr.bf16.mxu0 0
    %173 = vmatpush2.bf16.msra.mxu0 0
    %174 = vmatprep.mubr.bf16.mxu0 0
    %175 = vmatmul.mubr.bf16.gmra.mxu0 %v97
    %v176 = vpop.f32.mrf.mxu0
    %v177 = vadd.f32 %v46, %v176
    %v178 = vpop.f32.mrf.mxu0
    %v179 = vadd.f32 %v50, %v178
    %v180 = vpop.f32.mrf.mxu0
    %v181 = vadd.f32 %v46, %v180
    %v182 = vpop.f32.mrf.mxu0
    %v183 = vadd.f32 %v50, %v182
    %184 = vdwg.mxu0
    %v185 = vmax.f32 %v134, 0.0
    %v186 = vmax.f32 %v136, 0.0
    %v187 = vmax.f32 %v177, 0.0
    %v188 = vmax.f32 %v179, 0.0
    %v189 = vmax.f32 %v138, 0.0
    %v190 = vmax.f32 %v140, 0.0
    %v191 = vmax.f32 %v181, 0.0
    %v192 = vmax.f32 %v183, 0.0
    %v193 = vpack.c.bf16 %v189, %v185
    %v194 = vpack.c.bf16 %v190, %v186
    %v195 = vpack.c.bf16 %v191, %v187
    %v196 = vpack.c.bf16 %v192, %v188
    %v197 = vld [vmem:[%s3] sm:$0xf]
    %v198 = vld [vmem:[%s3 + $0x4] sm:$0xf]
    %v199 = vld [vmem:[%s3 + $0x8] sm:$0xf]
    %v200 = vld [vmem:[%s3 + $0xc] sm:$0xf]
    %v201 = vld [vmem:[%s3 + $0x10] sm:$0xf]
    %v202 = vld [vmem:[%s3 + $0x14] sm:$0xf]
    %v203 = vld [vmem:[%s3 + $0x18] sm:$0xf]
    %v204 = vld [vmem:[%s3 + $0x1c] sm:$0xf]
    %v205 = vld [vmem:[%s3 + $0x20] sm:$0xf]
    %v206 = vld [vmem:[%s3 + $0x24] sm:$0xf]
    %v207 = vld [vmem:[%s3 + $0x28] sm:$0xf]
    %v208 = vld [vmem:[%s3 + $0x2c] sm:$0xf]
    %v209 = vld [vmem:[%s3 + $0x30] sm:$0xf]
    %v210 = vld [vmem:[%s3 + $0x34] sm:$0xf]
    %v211 = vld [vmem:[%s3 + $0x38] sm:$0xf]
    %v212 = vld [vmem:[%s3 + $0x3c] sm:$0xf]
    %v213 = vld [vmem:[%s3 + $0x40] sm:$0xf]
    %v214 = vld [vmem:[%s3 + $0x44] sm:$0xf]
    %v215 = vld [vmem:[%s3 + $0x48] sm:$0xf]
    %v216 = vld [vmem:[%s3 + $0x4c] sm:$0xf]
    %v217 = vld [vmem:[%s3 + $0x50] sm:$0xf]
    %v218 = vld [vmem:[%s3 + $0x54] sm:$0xf]
    %v219 = vld [vmem:[%s3 + $0x58] sm:$0xf]
    %v220 = vld [vmem:[%s3 + $0x5c] sm:$0xf]
    %v221 = vld [vmem:[%s3 + $0x60] sm:$0xf]
    %v222 = vld [vmem:[%s3 + $0x64] sm:$0xf]
    %v223 = vld [vmem:[%s3 + $0x68] sm:$0xf]
    %v224 = vld [vmem:[%s3 + $0x6c] sm:$0xf]
    %v225 = vld [vmem:[%s3 + $0x70] sm:$0xf]
    %v226 = vld [vmem:[%s3 + $0x74] sm:$0xf]
    %v227 = vld [vmem:[%s3 + $0x78] sm:$0xf]
    %v228 = vld [vmem:[%s3 + $0x7c] sm:$0xf]
    %v229 = vld [vmem:[%s3 + $0x80] sm:$0xf]
    %v230 = vld [vmem:[%s3 + $0x84] sm:$0xf]
    %v231 = vld [vmem:[%s3 + $0x88] sm:$0xf]
    %v232 = vld [vmem:[%s3 + $0x8c] sm:$0xf]
    %v233 = vld [vmem:[%s3 + $0x90] sm:$0xf]
    %v234 = vld [vmem:[%s3 + $0x94] sm:$0xf]
    %v235 = vld [vmem:[%s3 + $0x98] sm:$0xf]
    %v236 = vld [vmem:[%s3 + $0x9c] sm:$0xf]
    %v237 = vld [vmem:[%s3 + $0xa0] sm:$0xf]
    %v238 = vld [vmem:[%s3 + $0xa4] sm:$0xf]
    %v239 = vld [vmem:[%s3 + $0xa8] sm:$0xf]
    %v240 = vld [vmem:[%s3 + $0xac] sm:$0xf]
    %v241 = vld [vmem:[%s3 + $0xb0] sm:$0xf]
    %v242 = vld [vmem:[%s3 + $0xb4] sm:$0xf]
    %v243 = vld [vmem:[%s3 + $0xb8] sm:$0xf]
    %v244 = vld [vmem:[%s3 + $0xbc] sm:$0xf]
    %v245 = vld [vmem:[%s3 + $0xc0] sm:$0xf]
    %v246 = vld [vmem:[%s3 + $0xc4] sm:$0xf]
    %v247 = vld [vmem:[%s3 + $0xc8] sm:$0xf]
    %v248 = vld [vmem:[%s3 + $0xcc] sm:$0xf]
    %v249 = vld [vmem:[%s3 + $0xd0] sm:$0xf]
    %v250 = vld [vmem:[%s3 + $0xd4] sm:$0xf]
    %v251 = vld [vmem:[%s3 + $0xd8] sm:$0xf]
    %v252 = vld [vmem:[%s3 + $0xdc] sm:$0xf]
    %v253 = vld [vmem:[%s3 + $0xe0] sm:$0xf]
    %v254 = vld [vmem:[%s3 + $0xe4] sm:$0xf]
    %v255 = vld [vmem:[%s3 + $0xe8] sm:$0xf]
    %v256 = vld [vmem:[%s3 + $0xec] sm:$0xf]
    %v257 = vld [vmem:[%s3 + $0xf0] sm:$0xf]
    %v258 = vld [vmem:[%s3 + $0xf4] sm:$0xf]
    %v259 = vld [vmem:[%s3 + $0xf8] sm:$0xf]
    %v260 = vld [vmem:[%s3 + $0xfc] sm:$0xf]
    %v261 = vld [vmem:[%s1 + $0x10] sm:$0xff]
    %v262 = vld [vmem:[%s1 + $0x18] sm:$0xff]
    %v263 = vld [vmem:[%s1 + $0x30] sm:$0xff]
    %v264 = vld [vmem:[%s1 + $0x38] sm:$0xff]
    %v265 = vld [vmem:[%s1 + $0x50] sm:$0xff]
    %v266 = vld [vmem:[%s1 + $0x58] sm:$0xff]
    %v267 = vld [vmem:[%s1 + $0x70] sm:$0xff]
    %v268 = vld [vmem:[%s1 + $0x78] sm:$0xff]
    %v269 = vld [vmem:[%s2 + $0x4] sm:$0xf]
    %v271 = vlaneseq
    %v272 = vshrl.u32 %v271, 7
    %v273 = vsub.s32 0, %v272
    %v274 = vrot.slane %v269, %v273
    %v275 = vlaneseq
    %v276 = vshrl.u32 %v275, 7
    %v277 = vsub.s32 1, %v276
    %v278 = vrot.slane %v269, %v277
    %v279 = vlaneseq
    %v280 = vshrl.u32 %v279, 7
    %v281 = vsub.s32 2, %v280
    %v282 = vrot.slane %v269, %v281
    %v283 = vlaneseq
    %v284 = vshrl.u32 %v283, 7
    %v285 = vsub.s32 3, %v284
    %v286 = vrot.slane %v269, %v285
    %v299 = vunpack.c.l.b16 %v261
    %v300 = vunpack.c.h.b16 %v261
    %v301 = vunpack.c.l.b16 %v262
    %v302 = vunpack.c.h.b16 %v262
    %v303 = vunpack.c.l.b16 %v263
    %v304 = vunpack.c.h.b16 %v263
    %v305 = vunpack.c.l.b16 %v264
    %v306 = vunpack.c.h.b16 %v264
    %v307 = vunpack.c.l.b16 %v265
    %v308 = vunpack.c.h.b16 %v265
    %v309 = vunpack.c.l.b16 %v266
    %v310 = vunpack.c.h.b16 %v266
    %v311 = vunpack.c.l.b16 %v267
    %v312 = vunpack.c.h.b16 %v267
    %v313 = vunpack.c.l.b16 %v268
    %v314 = vunpack.c.h.b16 %v268
    %v315 = vpack.c.b16 %v303, %v299
    %v316 = vpack.c.b16 %v304, %v300
    %v317 = vpack.c.b16 %v305, %v301
    %v318 = vpack.c.b16 %v306, %v302
    %v319 = vpack.c.b16 %v311, %v307
    %v320 = vpack.c.b16 %v312, %v308
    %v321 = vpack.c.b16 %v313, %v309
    %v322 = vpack.c.b16 %v314, %v310
    %331 = vmatprep.subr.bf16.mxu0 0
    %332 = vmatpush1.bf16.msra.mxu0 0
    %333 = vmatprep.subr.bf16.mxu0 0
    %334 = vmatpush1.bf16.msra.mxu0 0
    %335 = vmatprep.subr.bf16.mxu0 0
    %336 = vmatpush1.bf16.msra.mxu0 0
    %337 = vmatprep.subr.bf16.mxu0 0
    %338 = vmatpush1.bf16.msra.mxu0 0
    %339 = vmatprep.subr.bf16.mxu0 0
    %340 = vmatpush1.bf16.msra.mxu0 0
    %341 = vmatprep.subr.bf16.mxu0 0
    %342 = vmatpush1.bf16.msra.mxu0 0
    %343 = vmatprep.subr.bf16.mxu0 %v320
    %344 = vmatpush1.bf16.msra.mxu0 %v319
    %345 = vmatprep.subr.bf16.mxu0 %v316
    %346 = vmatpush1.bf16.msra.mxu0 %v315
    %347 = vmatprep.subr.bf16.mxu0 0
    %348 = vmatpush2.bf16.msra.mxu0 0
    %349 = vmatprep.subr.bf16.mxu0 0
    %350 = vmatpush2.bf16.msra.mxu0 0
    %351 = vmatprep.subr.bf16.mxu0 0
    %352 = vmatpush2.bf16.msra.mxu0 0
    %353 = vmatprep.subr.bf16.mxu0 0
    %354 = vmatpush2.bf16.msra.mxu0 0
    %355 = vmatprep.subr.bf16.mxu0 0
    %356 = vmatpush2.bf16.msra.mxu0 0
    %357 = vmatprep.subr.bf16.mxu0 0
    %358 = vmatpush2.bf16.msra.mxu0 0
    %359 = vmatprep.subr.bf16.mxu0 0
    %360 = vmatpush2.bf16.msra.mxu0 0
    %361 = vmatprep.subr.bf16.mxu0 0
    %362 = vmatpush2.bf16.msra.mxu0 0
    %363 = vmatprep.mubr.bf16.mxu0 0
    %364 = vmatmul.mubr.bf16.gmra.mxu0 %v97
    %v365 = vpop.f32.mrf.mxu0
    %v366 = vadd.f32 %v274, %v365
    %v367 = vpop.f32.mrf.mxu0
    %v368 = vadd.f32 %v278, %v367
    %v369 = vpop.f32.mrf.mxu0
    %v370 = vadd.f32 %v274, %v369
    %v371 = vpop.f32.mrf.mxu0
    %v372 = vadd.f32 %v278, %v371
    %373 = vdwg.mxu0
    %374 = vmatprep.subr.bf16.mxu0 0
    %375 = vmatpush1.bf16.msra.mxu0 0
    %376 = vmatprep.subr.bf16.mxu0 0
    %377 = vmatpush1.bf16.msra.mxu0 0
    %378 = vmatprep.subr.bf16.mxu0 0
    %379 = vmatpush1.bf16.msra.mxu0 0
    %380 = vmatprep.subr.bf16.mxu0 0
    %381 = vmatpush1.bf16.msra.mxu0 0
    %382 = vmatprep.subr.bf16.mxu0 0
    %383 = vmatpush1.bf16.msra.mxu0 0
    %384 = vmatprep.subr.bf16.mxu0 0
    %385 = vmatpush1.bf16.msra.mxu0 0
    %386 = vmatprep.subr.bf16.mxu0 %v322
    %387 = vmatpush1.bf16.msra.mxu0 %v321
    %388 = vmatprep.subr.bf16.mxu0 %v318
    %389 = vmatpush1.bf16.msra.mxu0 %v317
    %390 = vmatprep.subr.bf16.mxu0 0
    %391 = vmatpush2.bf16.msra.mxu0 0
    %392 = vmatprep.subr.bf16.mxu0 0
    %393 = vmatpush2.bf16.msra.mxu0 0
    %394 = vmatprep.subr.bf16.mxu0 0
    %395 = vmatpush2.bf16.msra.mxu0 0
    %396 = vmatprep.subr.bf16.mxu0 0
    %397 = vmatpush2.bf16.msra.mxu0 0
    %398 = vmatprep.subr.bf16.mxu0 0
    %399 = vmatpush2.bf16.msra.mxu0 0
    %400 = vmatprep.subr.bf16.mxu0 0
    %401 = vmatpush2.bf16.msra.mxu0 0
    %402 = vmatprep.subr.bf16.mxu0 0
    %403 = vmatpush2.bf16.msra.mxu0 0
    %404 = vmatprep.subr.bf16.mxu0 0
    %405 = vmatpush2.bf16.msra.mxu0 0
    %406 = vmatprep.mubr.bf16.mxu0 0
    %407 = vmatmul.mubr.bf16.gmra.mxu0 %v97
    %v408 = vpop.f32.mrf.mxu0
    %v409 = vadd.f32 %v282, %v408
    %v410 = vpop.f32.mrf.mxu0
    %v411 = vadd.f32 %v286, %v410
    %v412 = vpop.f32.mrf.mxu0
    %v413 = vadd.f32 %v282, %v412
    %v414 = vpop.f32.mrf.mxu0
    %v415 = vadd.f32 %v286, %v414
    %416 = vdwg.mxu0
    %v417 = vmax.f32 %v366, 0.0
    %v418 = vmax.f32 %v368, 0.0
    %v419 = vmax.f32 %v409, 0.0
    %v420 = vmax.f32 %v411, 0.0
    %v421 = vmax.f32 %v370, 0.0
    %v422 = vmax.f32 %v372, 0.0
    %v423 = vmax.f32 %v413, 0.0
    %v424 = vmax.f32 %v415, 0.0
    %v425 = vpack.c.bf16 %v421, %v417
    %v426 = vpack.c.bf16 %v422, %v418
    %v427 = vpack.c.bf16 %v423, %v419
    %v428 = vpack.c.bf16 %v424, %v420
    %v429 = vld [vmem:[%s3 + $0x100] sm:$0xf]
    %v430 = vld [vmem:[%s3 + $0x104] sm:$0xf]
    %v431 = vld [vmem:[%s3 + $0x108] sm:$0xf]
    %v432 = vld [vmem:[%s3 + $0x10c] sm:$0xf]
    %v433 = vld [vmem:[%s3 + $0x110] sm:$0xf]
    %v434 = vld [vmem:[%s3 + $0x114] sm:$0xf]
    %v435 = vld [vmem:[%s3 + $0x118] sm:$0xf]
    %v436 = vld [vmem:[%s3 + $0x11c] sm:$0xf]
    %v437 = vld [vmem:[%s3 + $0x120] sm:$0xf]
    %v438 = vld [vmem:[%s3 + $0x124] sm:$0xf]
    %v439 = vld [vmem:[%s3 + $0x128] sm:$0xf]
    %v440 = vld [vmem:[%s3 + $0x12c] sm:$0xf]
    %v441 = vld [vmem:[%s3 + $0x130] sm:$0xf]
    %v442 = vld [vmem:[%s3 + $0x134] sm:$0xf]
    %v443 = vld [vmem:[%s3 + $0x138] sm:$0xf]
    %v444 = vld [vmem:[%s3 + $0x13c] sm:$0xf]
    %v445 = vld [vmem:[%s3 + $0x140] sm:$0xf]
    %v446 = vld [vmem:[%s3 + $0x144] sm:$0xf]
    %v447 = vld [vmem:[%s3 + $0x148] sm:$0xf]
    %v448 = vld [vmem:[%s3 + $0x14c] sm:$0xf]
    %v449 = vld [vmem:[%s3 + $0x150] sm:$0xf]
    %v450 = vld [vmem:[%s3 + $0x154] sm:$0xf]
    %v451 = vld [vmem:[%s3 + $0x158] sm:$0xf]
    %v452 = vld [vmem:[%s3 + $0x15c] sm:$0xf]
    %v453 = vld [vmem:[%s3 + $0x160] sm:$0xf]
    %v454 = vld [vmem:[%s3 + $0x164] sm:$0xf]
    %v455 = vld [vmem:[%s3 + $0x168] sm:$0xf]
    %v456 = vld [vmem:[%s3 + $0x16c] sm:$0xf]
    %v457 = vld [vmem:[%s3 + $0x170] sm:$0xf]
    %v458 = vld [vmem:[%s3 + $0x174] sm:$0xf]
    %v459 = vld [vmem:[%s3 + $0x178] sm:$0xf]
    %v460 = vld [vmem:[%s3 + $0x17c] sm:$0xf]
    %v461 = vld [vmem:[%s3 + $0x180] sm:$0xf]
    %v462 = vld [vmem:[%s3 + $0x184] sm:$0xf]
    %v463 = vld [vmem:[%s3 + $0x188] sm:$0xf]
    %v464 = vld [vmem:[%s3 + $0x18c] sm:$0xf]
    %v465 = vld [vmem:[%s3 + $0x190] sm:$0xf]
    %v466 = vld [vmem:[%s3 + $0x194] sm:$0xf]
    %v467 = vld [vmem:[%s3 + $0x198] sm:$0xf]
    %v468 = vld [vmem:[%s3 + $0x19c] sm:$0xf]
    %v469 = vld [vmem:[%s3 + $0x1a0] sm:$0xf]
    %v470 = vld [vmem:[%s3 + $0x1a4] sm:$0xf]
    %v471 = vld [vmem:[%s3 + $0x1a8] sm:$0xf]
    %v472 = vld [vmem:[%s3 + $0x1ac] sm:$0xf]
    %v473 = vld [vmem:[%s3 + $0x1b0] sm:$0xf]
    %v474 = vld [vmem:[%s3 + $0x1b4] sm:$0xf]
    %v475 = vld [vmem:[%s3 + $0x1b8] sm:$0xf]
    %v476 = vld [vmem:[%s3 + $0x1bc] sm:$0xf]
    %v477 = vld [vmem:[%s3 + $0x1c0] sm:$0xf]
    %v478 = vld [vmem:[%s3 + $0x1c4] sm:$0xf]
    %v479 = vld [vmem:[%s3 + $0x1c8] sm:$0xf]
    %v480 = vld [vmem:[%s3 + $0x1cc] sm:$0xf]
    %v481 = vld [vmem:[%s3 + $0x1d0] sm:$0xf]
    %v482 = vld [vmem:[%s3 + $0x1d4] sm:$0xf]
    %v483 = vld [vmem:[%s3 + $0x1d8] sm:$0xf]
    %v484 = vld [vmem:[%s3 + $0x1dc] sm:$0xf]
    %v485 = vld [vmem:[%s3 + $0x1e0] sm:$0xf]
    %v486 = vld [vmem:[%s3 + $0x1e4] sm:$0xf]
    %v487 = vld [vmem:[%s3 + $0x1e8] sm:$0xf]
    %v488 = vld [vmem:[%s3 + $0x1ec] sm:$0xf]
    %v489 = vld [vmem:[%s3 + $0x1f0] sm:$0xf]
    %v490 = vld [vmem:[%s3 + $0x1f4] sm:$0xf]
    %v491 = vld [vmem:[%s3 + $0x1f8] sm:$0xf]
    %v492 = vld [vmem:[%s3 + $0x1fc] sm:$0xf]
    %v557 = vunpack.c.l.b16 %v429
    %v558 = vunpack.c.l.b16 %v430
    %v559 = vunpack.c.l.b16 %v431
    %v560 = vunpack.c.l.b16 %v432
    %v561 = vunpack.c.l.b16 %v433
    %v562 = vunpack.c.l.b16 %v434
    %v563 = vunpack.c.l.b16 %v435
    %v564 = vunpack.c.l.b16 %v436
    %v565 = vunpack.c.l.b16 %v437
    %v566 = vunpack.c.l.b16 %v438
    %v567 = vunpack.c.l.b16 %v439
    %v568 = vunpack.c.l.b16 %v440
    %v569 = vunpack.c.l.b16 %v441
    %v570 = vunpack.c.l.b16 %v442
    %v571 = vunpack.c.l.b16 %v443
    %v572 = vunpack.c.l.b16 %v444
    %v573 = vunpack.c.l.b16 %v445
    %v574 = vunpack.c.l.b16 %v446
    %v575 = vunpack.c.l.b16 %v447
    %v576 = vunpack.c.l.b16 %v448
    %v577 = vunpack.c.l.b16 %v449
    %v578 = vunpack.c.l.b16 %v450
    %v579 = vunpack.c.l.b16 %v451
    %v580 = vunpack.c.l.b16 %v452
    %v581 = vunpack.c.l.b16 %v453
    %v582 = vunpack.c.l.b16 %v454
    %v583 = vunpack.c.l.b16 %v455
    %v584 = vunpack.c.l.b16 %v456
    %v585 = vunpack.c.l.b16 %v457
    %v586 = vunpack.c.l.b16 %v458
    %v587 = vunpack.c.l.b16 %v459
    %v588 = vunpack.c.l.b16 %v460
    %v589 = vunpack.c.l.b16 %v461
    %v590 = vunpack.c.l.b16 %v462
    %v591 = vunpack.c.l.b16 %v463
    %v592 = vunpack.c.l.b16 %v464
    %v593 = vunpack.c.l.b16 %v465
    %v594 = vunpack.c.l.b16 %v466
    %v595 = vunpack.c.l.b16 %v467
    %v596 = vunpack.c.l.b16 %v468
    %v597 = vunpack.c.l.b16 %v469
    %v598 = vunpack.c.l.b16 %v470
    %v599 = vunpack.c.l.b16 %v471
    %v600 = vunpack.c.l.b16 %v472
    %v601 = vunpack.c.l.b16 %v473
    %v602 = vunpack.c.l.b16 %v474
    %v603 = vunpack.c.l.b16 %v475
    %v604 = vunpack.c.l.b16 %v476
    %v605 = vunpack.c.l.b16 %v477
    %v606 = vunpack.c.l.b16 %v478
    %v607 = vunpack.c.l.b16 %v479
    %v608 = vunpack.c.l.b16 %v480
    %v609 = vunpack.c.l.b16 %v481
    %v610 = vunpack.c.l.b16 %v482
    %v611 = vunpack.c.l.b16 %v483
    %v612 = vunpack.c.l.b16 %v484
    %v613 = vunpack.c.l.b16 %v485
    %v614 = vunpack.c.l.b16 %v486
    %v615 = vunpack.c.l.b16 %v487
    %v616 = vunpack.c.l.b16 %v488
    %v617 = vunpack.c.l.b16 %v489
    %v618 = vunpack.c.l.b16 %v490
    %v619 = vunpack.c.l.b16 %v491
    %v620 = vunpack.c.l.b16 %v492
    %v621 = vpack.c.b16 %v558, %v557
    %v622 = vpack.c.b16 %v560, %v559
    %v623 = vpack.c.b16 %v562, %v561
    %v624 = vpack.c.b16 %v564, %v563
    %v625 = vpack.c.b16 %v566, %v565
    %v626 = vpack.c.b16 %v568, %v567
    %v627 = vpack.c.b16 %v570, %v569
    %v628 = vpack.c.b16 %v572, %v571
    %v629 = vpack.c.b16 %v574, %v573
    %v630 = vpack.c.b16 %v576, %v575
    %v631 = vpack.c.b16 %v578, %v577
    %v632 = vpack.c.b16 %v580, %v579
    %v633 = vpack.c.b16 %v582, %v581
    %v634 = vpack.c.b16 %v584, %v583
    %v635 = vpack.c.b16 %v586, %v585
    %v636 = vpack.c.b16 %v588, %v587
    %v637 = vpack.c.b16 %v590, %v589
    %v638 = vpack.c.b16 %v592, %v591
    %v639 = vpack.c.b16 %v594, %v593
    %v640 = vpack.c.b16 %v596, %v595
    %v641 = vpack.c.b16 %v598, %v597
    %v642 = vpack.c.b16 %v600, %v599
    %v643 = vpack.c.b16 %v602, %v601
    %v644 = vpack.c.b16 %v604, %v603
    %v645 = vpack.c.b16 %v606, %v605
    %v646 = vpack.c.b16 %v608, %v607
    %v647 = vpack.c.b16 %v610, %v609
    %v648 = vpack.c.b16 %v612, %v611
    %v649 = vpack.c.b16 %v614, %v613
    %v650 = vpack.c.b16 %v616, %v615
    %v651 = vpack.c.b16 %v618, %v617
    %v652 = vpack.c.b16 %v620, %v619
    %685 = vmatprep.subr.bf16.mxu0 0
    %686 = vmatpush1.bf16.msra.mxu0 %v628
    %687 = vmatprep.subr.bf16.mxu0 0
    %688 = vmatpush1.bf16.msra.mxu0 %v627
    %689 = vmatprep.subr.bf16.mxu0 0
    %690 = vmatpush1.bf16.msra.mxu0 %v626
    %691 = vmatprep.subr.bf16.mxu0 0
    %692 = vmatpush1.bf16.msra.mxu0 %v625
    %693 = vmatprep.subr.bf16.mxu0 0
    %694 = vmatpush1.bf16.msra.mxu0 %v624
    %695 = vmatprep.subr.bf16.mxu0 0
    %696 = vmatpush1.bf16.msra.mxu0 %v623
    %697 = vmatprep.subr.bf16.mxu0 0
    %698 = vmatpush1.bf16.msra.mxu0 %v622
    %699 = vmatprep.subr.bf16.mxu0 0
    %700 = vmatpush1.bf16.msra.mxu0 %v621
    %701 = vmatprep.subr.bf16.mxu0 0
    %702 = vmatpush2.bf16.msra.mxu0 %v636
    %703 = vmatprep.subr.bf16.mxu0 0
    %704 = vmatpush2.bf16.msra.mxu0 %v635
    %705 = vmatprep.subr.bf16.mxu0 0
    %706 = vmatpush2.bf16.msra.mxu0 %v634
    %707 = vmatprep.subr.bf16.mxu0 0
    %708 = vmatpush2.bf16.msra.mxu0 %v633
    %709 = vmatprep.subr.bf16.mxu0 0
    %710 = vmatpush2.bf16.msra.mxu0 %v632
    %711 = vmatprep.subr.bf16.mxu0 0
    %712 = vmatpush2.bf16.msra.mxu0 %v631
    %713 = vmatprep.subr.bf16.mxu0 0
    %714 = vmatpush2.bf16.msra.mxu0 %v630
    %715 = vmatprep.subr.bf16.mxu0 0
    %716 = vmatpush2.bf16.msra.mxu0 %v629
    %717 = vmatprep.mubr.bf16.mxu0 %v426
    %718 = vmatmul.mubr.bf16.gmra.mxu0 %v425
    %v719 = vpop.f32.mrf.mxu0
    %v720 = vadd.f32 0.0, %v719
    %v721 = vpop.f32.mrf.mxu0
    %v722 = vpop.f32.mrf.mxu0
    %v723 = vadd.f32 0.0, %v722
    %v724 = vpop.f32.mrf.mxu0
    %725 = vdwg.mxu0
    %726 = vmatprep.subr.bf16.mxu0 0
    %727 = vmatpush1.bf16.msra.mxu0 %v644
    %728 = vmatprep.subr.bf16.mxu0 0
    %729 = vmatpush1.bf16.msra.mxu0 %v643
    %730 = vmatprep.subr.bf16.mxu0 0
    %731 = vmatpush1.bf16.msra.mxu0 %v642
    %732 = vmatprep.subr.bf16.mxu0 0
    %733 = vmatpush1.bf16.msra.mxu0 %v641
    %734 = vmatprep.subr.bf16.mxu0 0
    %735 = vmatpush1.bf16.msra.mxu0 %v640
    %736 = vmatprep.subr.bf16.mxu0 0
    %737 = vmatpush1.bf16.msra.mxu0 %v639
    %738 = vmatprep.subr.bf16.mxu0 0
    %739 = vmatpush1.bf16.msra.mxu0 %v638
    %740 = vmatprep.subr.bf16.mxu0 0
    %741 = vmatpush1.bf16.msra.mxu0 %v637
    %742 = vmatprep.subr.bf16.mxu0 0
    %743 = vmatpush2.bf16.msra.mxu0 %v652
    %744 = vmatprep.subr.bf16.mxu0 0
    %745 = vmatpush2.bf16.msra.mxu0 %v651
    %746 = vmatprep.subr.bf16.mxu0 0
    %747 = vmatpush2.bf16.msra.mxu0 %v650
    %748 = vmatprep.subr.bf16.mxu0 0
    %749 = vmatpush2.bf16.msra.mxu0 %v649
    %750 = vmatprep.subr.bf16.mxu0 0
    %751 = vmatpush2.bf16.msra.mxu0 %v648
    %752 = vmatprep.subr.bf16.mxu0 0
    %753 = vmatpush2.bf16.msra.mxu0 %v647
    %754 = vmatprep.subr.bf16.mxu0 0
    %755 = vmatpush2.bf16.msra.mxu0 %v646
    %756 = vmatprep.subr.bf16.mxu0 0
    %757 = vmatpush2.bf16.msra.mxu0 %v645
    %758 = vmatprep.mubr.bf16.mxu0 %v428
    %759 = vmatmul.mubr.bf16.gmra.mxu0 %v427
    %v760 = vpop.f32.mrf.mxu0
    %v761 = vadd.f32 %v720, %v760
    %v762 = vpop.f32.mrf.mxu0
    %v763 = vpop.f32.mrf.mxu0
    %v764 = vadd.f32 %v723, %v763
    %v765 = vpop.f32.mrf.mxu0
    %766 = vdwg.mxu0
    %v831 = vunpack.c.l.b16 %v197
    %v832 = vunpack.c.l.b16 %v198
    %v833 = vunpack.c.l.b16 %v199
    %v834 = vunpack.c.l.b16 %v200
    %v835 = vunpack.c.l.b16 %v201
    %v836 = vunpack.c.l.b16 %v202
    %v837 = vunpack.c.l.b16 %v203
    %v838 = vunpack.c.l.b16 %v204
    %v839 = vunpack.c.l.b16 %v205
    %v840 = vunpack.c.l.b16 %v206
    %v841 = vunpack.c.l.b16 %v207
    %v842 = vunpack.c.l.b16 %v208
    %v843 = vunpack.c.l.b16 %v209
    %v844 = vunpack.c.l.b16 %v210
    %v845 = vunpack.c.l.b16 %v211
    %v846 = vunpack.c.l.b16 %v212
    %v847 = vunpack.c.l.b16 %v213
    %v848 = vunpack.c.l.b16 %v214
    %v849 = vunpack.c.l.b16 %v215
    %v850 = vunpack.c.l.b16 %v216
    %v851 = vunpack.c.l.b16 %v217
    %v852 = vunpack.c.l.b16 %v218
    %v853 = vunpack.c.l.b16 %v219
    %v854 = vunpack.c.l.b16 %v220
    %v855 = vunpack.c.l.b16 %v221
    %v856 = vunpack.c.l.b16 %v222
    %v857 = vunpack.c.l.b16 %v223
    %v858 = vunpack.c.l.b16 %v224
    %v859 = vunpack.c.l.b16 %v225
    %v860 = vunpack.c.l.b16 %v226
    %v861 = vunpack.c.l.b16 %v227
    %v862 = vunpack.c.l.b16 %v228
    %v863 = vunpack.c.l.b16 %v229
    %v864 = vunpack.c.l.b16 %v230
    %v865 = vunpack.c.l.b16 %v231
    %v866 = vunpack.c.l.b16 %v232
    %v867 = vunpack.c.l.b16 %v233
    %v868 = vunpack.c.l.b16 %v234
    %v869 = vunpack.c.l.b16 %v235
    %v870 = vunpack.c.l.b16 %v236
    %v871 = vunpack.c.l.b16 %v237
    %v872 = vunpack.c.l.b16 %v238
    %v873 = vunpack.c.l.b16 %v239
    %v874 = vunpack.c.l.b16 %v240
    %v875 = vunpack.c.l.b16 %v241
    %v876 = vunpack.c.l.b16 %v242
    %v877 = vunpack.c.l.b16 %v243
    %v878 = vunpack.c.l.b16 %v244
    %v879 = vunpack.c.l.b16 %v245
    %v880 = vunpack.c.l.b16 %v246
    %v881 = vunpack.c.l.b16 %v247
    %v882 = vunpack.c.l.b16 %v248
    %v883 = vunpack.c.l.b16 %v249
    %v884 = vunpack.c.l.b16 %v250
    %v885 = vunpack.c.l.b16 %v251
    %v886 = vunpack.c.l.b16 %v252
    %v887 = vunpack.c.l.b16 %v253
    %v888 = vunpack.c.l.b16 %v254
    %v889 = vunpack.c.l.b16 %v255
    %v890 = vunpack.c.l.b16 %v256
    %v891 = vunpack.c.l.b16 %v257
    %v892 = vunpack.c.l.b16 %v258
    %v893 = vunpack.c.l.b16 %v259
    %v894 = vunpack.c.l.b16 %v260
    %v895 = vpack.c.b16 %v832, %v831
    %v896 = vpack.c.b16 %v834, %v833
    %v897 = vpack.c.b16 %v836, %v835
    %v898 = vpack.c.b16 %v838, %v837
    %v899 = vpack.c.b16 %v840, %v839
    %v900 = vpack.c.b16 %v842, %v841
    %v901 = vpack.c.b16 %v844, %v843
    %v902 = vpack.c.b16 %v846, %v845
    %v903 = vpack.c.b16 %v848, %v847
    %v904 = vpack.c.b16 %v850, %v849
    %v905 = vpack.c.b16 %v852, %v851
    %v906 = vpack.c.b16 %v854, %v853
    %v907 = vpack.c.b16 %v856, %v855
    %v908 = vpack.c.b16 %v858, %v857
    %v909 = vpack.c.b16 %v860, %v859
    %v910 = vpack.c.b16 %v862, %v861
    %v911 = vpack.c.b16 %v864, %v863
    %v912 = vpack.c.b16 %v866, %v865
    %v913 = vpack.c.b16 %v868, %v867
    %v914 = vpack.c.b16 %v870, %v869
    %v915 = vpack.c.b16 %v872, %v871
    %v916 = vpack.c.b16 %v874, %v873
    %v917 = vpack.c.b16 %v876, %v875
    %v918 = vpack.c.b16 %v878, %v877
    %v919 = vpack.c.b16 %v880, %v879
    %v920 = vpack.c.b16 %v882, %v881
    %v921 = vpack.c.b16 %v884, %v883
    %v922 = vpack.c.b16 %v886, %v885
    %v923 = vpack.c.b16 %v888, %v887
    %v924 = vpack.c.b16 %v890, %v889
    %v925 = vpack.c.b16 %v892, %v891
    %v926 = vpack.c.b16 %v894, %v893
    %959 = vmatprep.subr.bf16.mxu0 0
    %960 = vmatpush1.bf16.msra.mxu0 %v902
    %961 = vmatprep.subr.bf16.mxu0 0
    %962 = vmatpush1.bf16.msra.mxu0 %v901
    %963 = vmatprep.subr.bf16.mxu0 0
    %964 = vmatpush1.bf16.msra.mxu0 %v900
    %965 = vmatprep.subr.bf16.mxu0 0
    %966 = vmatpush1.bf16.msra.mxu0 %v899
    %967 = vmatprep.subr.bf16.mxu0 0
    %968 = vmatpush1.bf16.msra.mxu0 %v898
    %969 = vmatprep.subr.bf16.mxu0 0
    %970 = vmatpush1.bf16.msra.mxu0 %v897
    %971 = vmatprep.subr.bf16.mxu0 0
    %972 = vmatpush1.bf16.msra.mxu0 %v896
    %973 = vmatprep.subr.bf16.mxu0 0
    %974 = vmatpush1.bf16.msra.mxu0 %v895
    %975 = vmatprep.subr.bf16.mxu0 0
    %976 = vmatpush2.bf16.msra.mxu0 %v910
    %977 = vmatprep.subr.bf16.mxu0 0
    %978 = vmatpush2.bf16.msra.mxu0 %v909
    %979 = vmatprep.subr.bf16.mxu0 0
    %980 = vmatpush2.bf16.msra.mxu0 %v908
    %981 = vmatprep.subr.bf16.mxu0 0
    %982 = vmatpush2.bf16.msra.mxu0 %v907
    %983 = vmatprep.subr.bf16.mxu0 0
    %984 = vmatpush2.bf16.msra.mxu0 %v906
    %985 = vmatprep.subr.bf16.mxu0 0
    %986 = vmatpush2.bf16.msra.mxu0 %v905
    %987 = vmatprep.subr.bf16.mxu0 0
    %988 = vmatpush2.bf16.msra.mxu0 %v904
    %989 = vmatprep.subr.bf16.mxu0 0
    %990 = vmatpush2.bf16.msra.mxu0 %v903
    %991 = vmatprep.mubr.bf16.mxu0 %v194
    %992 = vmatmul.mubr.bf16.gmra.mxu0 %v193
    %v993 = vpop.f32.mrf.mxu0
    %v994 = vadd.f32 %v761, %v993
    %v995 = vpop.f32.mrf.mxu0
    %v996 = vpop.f32.mrf.mxu0
    %v997 = vadd.f32 %v764, %v996
    %v998 = vpop.f32.mrf.mxu0
    %999 = vdwg.mxu0
    %1000 = vmatprep.subr.bf16.mxu0 0
    %1001 = vmatpush1.bf16.msra.mxu0 %v918
    %1002 = vmatprep.subr.bf16.mxu0 0
    %1003 = vmatpush1.bf16.msra.mxu0 %v917
    %1004 = vmatprep.subr.bf16.mxu0 0
    %1005 = vmatpush1.bf16.msra.mxu0 %v916
    %1006 = vmatprep.subr.bf16.mxu0 0
    %1007 = vmatpush1.bf16.msra.mxu0 %v915
    %1008 = vmatprep.subr.bf16.mxu0 0
    %1009 = vmatpush1.bf16.msra.mxu0 %v914
    %1010 = vmatprep.subr.bf16.mxu0 0
    %1011 = vmatpush1.bf16.msra.mxu0 %v913
    %1012 = vmatprep.subr.bf16.mxu0 0
    %1013 = vmatpush1.bf16.msra.mxu0 %v912
    %1014 = vmatprep.subr.bf16.mxu0 0
    %1015 = vmatpush1.bf16.msra.mxu0 %v911
    %1016 = vmatprep.subr.bf16.mxu0 0
    %1017 = vmatpush2.bf16.msra.mxu0 %v926
    %1018 = vmatprep.subr.bf16.mxu0 0
    %1019 = vmatpush2.bf16.msra.mxu0 %v925
    %1020 = vmatprep.subr.bf16.mxu0 0
    %1021 = vmatpush2.bf16.msra.mxu0 %v924
    %1022 = vmatprep.subr.bf16.mxu0 0
    %1023 = vmatpush2.bf16.msra.mxu0 %v923
    %1024 = vmatprep.subr.bf16.mxu0 0
    %1025 = vmatpush2.bf16.msra.mxu0 %v922
    %1026 = vmatprep.subr.bf16.mxu0 0
    %1027 = vmatpush2.bf16.msra.mxu0 %v921
    %1028 = vmatprep.subr.bf16.mxu0 0
    %1029 = vmatpush2.bf16.msra.mxu0 %v920
    %1030 = vmatprep.subr.bf16.mxu0 0
    %1031 = vmatpush2.bf16.msra.mxu0 %v919
    %1032 = vmatprep.mubr.bf16.mxu0 %v196
    %1033 = vmatmul.mubr.bf16.gmra.mxu0 %v195
    %v1034 = vpop.f32.mrf.mxu0
    %v1035 = vadd.f32 %v994, %v1034
    %v1036 = vpop.f32.mrf.mxu0
    %v1037 = vpop.f32.mrf.mxu0
    %v1038 = vadd.f32 %v997, %v1037
    %v1039 = vpop.f32.mrf.mxu0
    %1040 = vdwg.mxu0
    %v1041 = vld [vmem:[%s4] sm:$0x1]
    %v1043 = vlaneseq
    %v1044 = vshrl.u32 %v1043, 7
    %v1045 = vsub.s32 0, %v1044
    %v1046 = vrot.slane %v1041, %v1045
    %v1048 = vadd.f32 %v1035, %v1046
    %v1049 = vadd.f32 %v1038, %v1046
    %1050 = vst.msk [vmem:[#allocation2] sm:$0xff] %vm95, %v1048
    %1051 = vst.msk [vmem:[#allocation2 + $0x8] sm:$0xff] %vm95, %v1049
    // Predicated region
    $region22: #{feed_forward.1} parent=1 // pred_check
      _
    $region23: #{feed_forward.1} parent=1 // pred_check_branch
      %1053 = sbr.rel (0) target = $region25
    $region24: #{feed_forward.1} parent=1 // pred_region
      %s1055 = ssub.s32 256, 256
      %1056 = vsyncadd [#allocation3], %s1055
      %s1057 = sshll.u32 [#allocation2], 4
      %s1058 = int_to_ptr.vmem [resolvable:$true] %s1057
      %1063 = dma.vmem_to_hbm [thread:$0]  %s1058, 256, %s5, [#allocation3], 128, 128, 8
    $region25: #{feed_forward.1} parent=1 // pred_fallthru
      _
    // Predicated region
    $region26: #{feed_forward.1} parent=1 // pred_check
      _
    $region27: #{feed_forward.1} parent=1 // pred_check_branch
      %1065 = sbr.rel (0) target = $region29
    $region28: #{feed_forward.1} parent=1 // pred_region
      %1066 = dma.done [#allocation3], 256
    $region29: #{feed_forward.1} parent=1 // pred_fallthru
      _
    %1067 = vsyncpa [#allocation3], 1

</llo_original>
